<compile_context>
chip_gen: v6e
topology: v6e:2x2x1
jax: 0.10.0
libtpu: 0.0.40
codegen_flags: <defaults>
</compile_context>

<pallas_src>
import functools

import jax
import jax.numpy as jnp
from jax.experimental import pallas as pl
from jax.experimental.pallas import tpu as pltpu

LANE = 128
SUBLANE = 8


def _round_up(x, m):
    return ((x + m - 1) // m) * m


# ----------------------------------------------------------------------------
# Fused kernel.  One grid step = (branch b, layer l, adjacency row-tile t):
#   at t==0:   [xl | xg] = carry @ [Wl | Wg]          (one 2*Dp-wide MXU pass)
#   per tile:  h[rows]   = xl[rows] + A_tile @ xg     (bf16 MXU, f32 acc)
#              s1 += colsum(h_tile); s2 += colsum(h_tile^2)
#   at t==T-1: BatchNorm1d (batch stats, biased var, gamma folded into scale),
#              ReLU + carry between layers, emit at the last layer.
# ----------------------------------------------------------------------------
def fused_trace_gcn_kernel(x_ref, a_ref, w_ref, gamma_ref, beta_ref, o_ref,
                           carry_scr, xl_scr, xg_scr, h_scr, s1_scr, s2_scr,
                           *, depth: int, n_tiles: int, tile_n: int,
                           n_real: int, n_pad: int, eps: float):
    layer = pl.program_id(1)
    t = pl.program_id(2)
    dp = o_ref.shape[-1]

    # Start of each branch: seed the activation carry from the node features.
    @pl.when(jnp.logical_and(layer == 0, t == 0))
    def _():
        carry_scr[...] = x_ref[...].astype(carry_scr.dtype)

    # Start of each layer: fused local/propagate transform + reset BN stats.
    @pl.when(t == 0)
    def _():
        xw = jnp.dot(carry_scr[...], w_ref[...],
                     preferred_element_type=jnp.float32)          # (Np, 2*Dp) f32
        xl_scr[...] = xw[:, :dp]                                  # local half (f32)
        xg_scr[...] = xw[:, dp:].astype(xg_scr.dtype)             # propagate half (bf16)
        s1_scr[...] = jnp.zeros_like(s1_scr)
        s2_scr[...] = jnp.zeros_like(s2_scr)

    # Propagation on this adjacency row-tile:  h[rows] = xl[rows] + A_t @ xg
    row0 = pl.multiple_of(t * tile_n, tile_n)
    rows = pl.ds(row0, tile_n)
    h_tile = xl_scr[rows, :] + jnp.dot(a_ref[...], xg_scr[...],
                                       preferred_element_type=jnp.float32)
    h_scr[rows, :] = h_tile
    # Single-pass BN statistics accumulated across tiles.
    s1_scr[...] += jnp.sum(h_tile, axis=0, keepdims=True)
    s2_scr[...] += jnp.sum(h_tile * h_tile, axis=0, keepdims=True)

    # End-of-layer epilogue.
    def _bn():
        inv_n = 1.0 / n_real
        mean = s1_scr[...] * inv_n
        var = s2_scr[...] * inv_n - mean * mean                   # biased variance
        scale = gamma_ref[...] * jax.lax.rsqrt(var + eps)         # gamma folded in
        shift = beta_ref[...] - mean * scale
        hn = h_scr[...] * scale + shift
        if n_pad > n_real:
            # Keep padded rows exactly zero so next-layer batch stats stay exact.
            row_ids = jax.lax.broadcasted_iota(jnp.int32, (n_pad, 1), 0)
            hn = jnp.where(row_ids < n_real, hn, 0.0)
        return hn

    last_tile = t == n_tiles - 1

    @pl.when(jnp.logical_and(last_tile, layer != depth - 1))
    def _():
        carry_scr[...] = jnp.maximum(_bn(), 0.0).astype(carry_scr.dtype)

    @pl.when(jnp.logical_and(last_tile, layer == depth - 1))
    def _():
        o_ref[...] = _bn().astype(o_ref.dtype)


# ----------------------------------------------------------------------------
# Graph glue: torch_geometric gcn_norm (add_self_loops=False) -> dense adjacency
#   A[t, s] = sum_{e:(s->t)} d(t)^-1/2 * w_e * d(s)^-1/2,  d = in-degree by weight
# ----------------------------------------------------------------------------
def build_norm_adj(edge_index, edge_weight, num_nodes):
    src = edge_index[0]
    dst = edge_index[1]
    deg = jnp.zeros((num_nodes,), jnp.float32).at[dst].add(edge_weight)
    dinv = jnp.where(deg > 0, 1.0 / jnp.sqrt(deg), 0.0)
    norm = dinv[src] * edge_weight * dinv[dst]
    a = jnp.zeros((num_nodes, num_nodes), jnp.float32).at[dst, src].add(norm)
    return a


def _pick_vmem_limit_bytes():
    """Per-generation VMEM budget: ~100 MiB on v5e/v6e, ~56 MiB on v7x."""
    cap = None
    try:
        cap = int(pltpu.get_tpu_info().vmem_capacity_bytes)
    except Exception:
        cap = None
    if not cap or cap <= 0:
        cap = 64 * 1024 * 1024  # conservative (v7x physical)
    return int(min(cap - 8 * 1024 * 1024, 100 * 1024 * 1024))


# ----------------------------------------------------------------------------
# TraceGCN forward: both DiGCN branches fused into one gridded pallas_call.
# ----------------------------------------------------------------------------
def trace_gcn_forward(feats, in_edge_index, out_edge_index, edge_weight, params,
                      *, depth=3, eps=1e-5, row_tile=256):
    n, d = feats.shape
    d_pad = _round_up(d, LANE)
    tile_n = min(_round_up(row_tile, SUBLANE), _round_up(n, SUBLANE))
    n_pad = _round_up(n, tile_n)
    n_tiles = n_pad // tile_n

    # Dense normalized adjacencies, zero-padded, stacked by branch, bf16 for MXU.
    def pad_adj(a):
        return jnp.zeros((n_pad, n_pad), jnp.float32).at[:n, :n].set(a)

    a_in = build_norm_adj(in_edge_index, edge_weight, n)
    a_out = build_norm_adj(out_edge_index, edge_weight, n)
    a_stack = jnp.stack([pad_adj(a_in), pad_adj(a_out)]).astype(jnp.bfloat16)

    # Node features zero-padded to (Np, Dp); zeros stay zeros through the net.
    x_pad = jnp.zeros((n_pad, d_pad), jnp.float32).at[:n, :d].set(feats)

    def pad_w(w):
        return jnp.zeros((d_pad, d_pad), jnp.float32).at[:d, :d].set(w)

    # Per-layer fused weights [Wl | Wg] (bf16) and BN params (f32), stacked by
    # (branch, layer) along the leading axis and streamed by the index_map.
    w_list, gamma_list, beta_list = [], [], []
    for branch in ("gcn1", "gcn2"):
        for p in params[branch]:
            w_list.append(jnp.concatenate([pad_w(p["wl"]), pad_w(p["wg"])], axis=1))
            gamma_list.append(jnp.ones((1, d_pad), jnp.float32).at[0, :d].set(p["gamma"]))
            beta_list.append(jnp.zeros((1, d_pad), jnp.float32).at[0, :d].set(p["beta"]))
    w_stack = jnp.stack(w_list).astype(jnp.bfloat16)      # (2*depth, Dp, 2*Dp)
    gamma_stack = jnp.stack(gamma_list)                   # (2*depth, 1, Dp)
    beta_stack = jnp.stack(beta_list)                     # (2*depth, 1, Dp)

    kernel = functools.partial(fused_trace_gcn_kernel, depth=depth,
                               n_tiles=n_tiles, tile_n=tile_n,
                               n_real=n, n_pad=n_pad, eps=eps)

    out = pl.pallas_call(
        kernel,
        out_shape=jax.ShapeDtypeStruct((2, n_pad, d_pad), jnp.float32),
        grid_spec=pltpu.PrefetchScalarGridSpec(
            num_scalar_prefetch=0,
            grid=(2, depth, n_tiles),
            in_specs=[
                # node features: resident across the whole grid
                pl.BlockSpec((n_pad, d_pad), lambda b, l, t: (0, 0)),
                # adjacency row-tile: streamed + double-buffered per tile
                pl.BlockSpec((None, tile_n, n_pad), lambda b, l, t: (b, t, 0)),
                # per-(branch, layer) fused weight / BN params
                pl.BlockSpec((None, d_pad, 2 * d_pad),
                             lambda b, l, t: (b * depth + l, 0, 0)),
                pl.BlockSpec((None, 1, d_pad), lambda b, l, t: (b * depth + l, 0, 0)),
                pl.BlockSpec((None, 1, d_pad), lambda b, l, t: (b * depth + l, 0, 0)),
            ],
            out_specs=pl.BlockSpec((None, n_pad, d_pad), lambda b, l, t: (b, 0, 0)),
            scratch_shapes=[
                pltpu.VMEM((n_pad, d_pad), jnp.bfloat16),   # activation carry
                pltpu.VMEM((n_pad, d_pad), jnp.float32),    # local transform xl
                pltpu.VMEM((n_pad, d_pad), jnp.bfloat16),   # propagate input xg
                pltpu.VMEM((n_pad, d_pad), jnp.float32),    # pre-BN layer result
                pltpu.VMEM((1, d_pad), jnp.float32),        # BN column sums
                pltpu.VMEM((1, d_pad), jnp.float32),        # BN column sum-of-squares
            ],
        ),
        compiler_params=pltpu.CompilerParams(
            dimension_semantics=("parallel", "arbitrary", "arbitrary"),
            vmem_limit_bytes=_pick_vmem_limit_bytes(),
        ),
    )(x_pad, a_stack, w_stack, gamma_stack, beta_stack)

    # Strip padding and concat branches along features (torch.cat dim=1).
    return jnp.concatenate([out[0, :n, :d], out[1, :n, :d]], axis=1)


# ----------------------------------------------------------------------------
# Pure-JAX reference (same bf16 casting choices as the kernel) for validation.
# ----------------------------------------------------------------------------
def trace_gcn_reference(feats, in_edge_index, out_edge_index, edge_weight, params,
                        *, depth=3, eps=1e-5):
    n = feats.shape[0]

    def digcn(x, a, layers):
        a16 = a.astype(jnp.bfloat16)
        h = x
        for i, p in enumerate(layers):
            hb = h.astype(jnp.bfloat16)
            hl = jnp.dot(hb, p["wl"].astype(jnp.bfloat16),
                         preferred_element_type=jnp.float32)
            xg = jnp.dot(hb, p["wg"].astype(jnp.bfloat16),
                         preferred_element_type=jnp.float32).astype(jnp.bfloat16)
            z = hl + jnp.dot(a16, xg, preferred_element_type=jnp.float32)
            mean = jnp.mean(z, axis=0, keepdims=True)
            var = jnp.mean((z - mean) ** 2, axis=0, keepdims=True)
            z = (z - mean) * jax.lax.rsqrt(var + eps) * p["gamma"][None, :] \
                + p["beta"][None, :]
            if i != depth - 1:
                z = jnp.maximum(z, 0.0)
            h = z
        return h

    a_in = build_norm_adj(in_edge_index, edge_weight, n)
    a_out = build_norm_adj(out_edge_index, edge_weight, n)
    return jnp.concatenate([digcn(feats, a_in, params["gcn1"]),
                            digcn(feats, a_out, params["gcn2"])], axis=1)


# ----------------------------------------------------------------------------
# Deterministic parameter init (synthetic; mirrors module shapes)
# ----------------------------------------------------------------------------
def init_params(key, emb_dim, depth=3):
    params = {}
    for branch in ("gcn1", "gcn2"):
        layers = []
        for _ in range(depth):
            key, k1, k2 = jax.random.split(key, 3)
            scale = 1.0 / jnp.sqrt(emb_dim)
            layers.append({
                # nn.Linear weight (out,in) acts as x @ W^T; store transposed (in,out).
                "wl": jax.random.uniform(k1, (emb_dim, emb_dim), jnp.float32,
                                         -scale, scale),
                "wg": jax.random.uniform(k2, (emb_dim, emb_dim), jnp.float32,
                                         -scale, scale),
                "gamma": jnp.ones((emb_dim,), jnp.float32),
                "beta": jnp.zeros((emb_dim,), jnp.float32),
            })
        params[branch] = layers
    return params


if __name__ == "__main__":
    # NOTE: small demo shapes for correctness; tune tile_n / buffering at real N.
    key = jax.random.PRNGKey(0)
    emb_dim = 32
    num_nodes = 16
    num_edges = 24

    k_feat, k_in, k_out, k_w, k_par = jax.random.split(key, 5)
    feats = jax.random.normal(k_feat, (num_nodes, emb_dim), jnp.float32)
    in_edge_index = jax.random.randint(k_in, (2, num_edges), 0, num_nodes)
    out_edge_index = jax.random.randint(k_out, (2, num_edges), 0, num_nodes)
    edge_weight = jax.random.uniform(k_w, (num_edges,), jnp.float32, 0.1, 1.0)

    params = init_params(k_par, emb_dim)

    out = trace_gcn_forward(feats, in_edge_index, out_edge_index,
                            edge_weight, params)
    jax.block_until_ready(out)
    assert out.shape == (num_nodes, 2 * emb_dim), out.shape
    assert bool(jnp.all(jnp.isfinite(out)))

    ref = trace_gcn_reference(feats, in_edge_index, out_edge_index,
                              edge_weight, params)
    jax.block_until_ready(ref)
    max_err = float(jnp.max(jnp.abs(out - ref)))
    assert max_err < 5e-2, f"max abs error vs reference: {max_err}"

    print("KERNEL_OK")
</pallas_src>

<mosaic_0001>
module attributes {stable_mosaic.version = 11 : i64} {
  func.func @fused_trace_gcn_kernel(%arg0: i32, %arg1: i32, %arg2: i32, %arg3: memref<16x128xf32, #tpu.memory_space<vmem>>, %arg4: memref<1x16x16xbf16, #tpu.memory_space<vmem>>, %arg5: memref<1x128x256xbf16, #tpu.memory_space<vmem>>, %arg6: memref<1x1x128xf32, #tpu.memory_space<vmem>>, %arg7: memref<1x1x128xf32, #tpu.memory_space<vmem>>, %arg8: memref<1x16x128xf32, #tpu.memory_space<vmem>>, %arg9: memref<16x128xbf16, #tpu.memory_space<vmem>>, %arg10: memref<16x128xf32, #tpu.memory_space<vmem>>, %arg11: memref<16x128xbf16, #tpu.memory_space<vmem>>, %arg12: memref<16x128xf32, #tpu.memory_space<vmem>>, %arg13: memref<1x128xf32, #tpu.memory_space<vmem>>, %arg14: memref<1x128xf32, #tpu.memory_space<vmem>>) attributes {dimension_semantics = [#tpu.dimension_semantics<parallel>, #tpu.dimension_semantics<arbitrary>, #tpu.dimension_semantics<arbitrary>], iteration_bounds = array<i64: 2, 3, 1>, scalar_prefetch = 0 : i64, scratch_operands = 6 : i64, tpu.core_type = #tpu.core_type<tc>, window_params = [{pipeline_mode = #tpu.pipeline_mode<synchronous>, transform_indices = @transform_0, window_bounds = array<i64: 16, 128>}, {transform_indices = @transform_1, window_bounds = array<i64: 1, 16, 16>}, {transform_indices = @transform_2, window_bounds = array<i64: 1, 128, 256>}, {transform_indices = @transform_3, window_bounds = array<i64: 1, 1, 128>}, {transform_indices = @transform_4, window_bounds = array<i64: 1, 1, 128>}, {transform_indices = @transform_5, window_bounds = array<i64: 1, 16, 128>}]} {
    %c0_i32 = arith.constant 0 : i32
    %0 = arith.cmpi eq, %arg1, %c0_i32 : i32
    %c0_i32_0 = arith.constant 0 : i32
    %1 = arith.cmpi eq, %arg2, %c0_i32_0 : i32
    %2 = arith.andi %0, %1 : i1
    %3 = arith.extui %2 : i1 to i32
    %c0_i32_1 = arith.constant 0 : i32
    %4 = arith.cmpi ne, %3, %c0_i32_1 : i32
    scf.if %4 {
      %c0_24 = arith.constant 0 : index
      %c0_25 = arith.constant 0 : index
      %39 = vector.load %arg3[%c0_24, %c0_25] : memref<16x128xf32, #tpu.memory_space<vmem>>, vector<16x128xf32>
      %40 = arith.truncf %39 : vector<16x128xf32> to vector<16x128xbf16>
      %c0_26 = arith.constant 0 : index
      %c0_27 = arith.constant 0 : index
      %41 = vector.load %arg9[%c0_26, %c0_27] : memref<16x128xbf16, #tpu.memory_space<vmem>>, vector<16x128xbf16>
      tpu.vector_store %arg9[%c0_26, %c0_27], %40 {strides = array<i32>} : memref<16x128xbf16, #tpu.memory_space<vmem>>, vector<16x128xbf16>,
    } else {
    }
    %c0_i32_2 = arith.constant 0 : i32
    %5 = arith.cmpi eq, %arg2, %c0_i32_2 : i32
    %6 = arith.extui %5 : i1 to i32
    %c0_i32_3 = arith.constant 0 : i32
    %7 = arith.cmpi ne, %6, %c0_i32_3 : i32
    scf.if %7 {
      %c0_24 = arith.constant 0 : index
      %c0_25 = arith.constant 0 : index
      %39 = vector.load %arg9[%c0_24, %c0_25] : memref<16x128xbf16, #tpu.memory_space<vmem>>, vector<16x128xbf16>
      %c0_26 = arith.constant 0 : index
      %c0_27 = arith.constant 0 : index
      %c0_28 = arith.constant 0 : index
      %40 = vector.load %arg5[%c0_26, %c0_27, %c0_28] : memref<1x128x256xbf16, #tpu.memory_space<vmem>>, vector<1x128x256xbf16>
      %41 = vector.shape_cast %40 : vector<1x128x256xbf16> to vector<128x256xbf16>
      %cst_29 = arith.constant dense<0.000000e+00> : vector<16x256xf32>
      %42 = tpu.matmul %39, %41, %cst_29 {dimension_numbers = #tpu.dot_dimension_numbers<[1], [0], [0], [1], [0, 0, 1, 1], [], []>} : vector<16x128xbf16>, vector<128x256xbf16>, vector<16x256xf32> -> vector<16x256xf32>
      %43 = vector.extract_strided_slice %42 {offsets = [0, 0], sizes = [16, 128], strides = [1, 1]} : vector<16x256xf32> to vector<16x128xf32>
      %c0_30 = arith.constant 0 : index
      %c0_31 = arith.constant 0 : index
      %44 = vector.load %arg10[%c0_30, %c0_31] : memref<16x128xf32, #tpu.memory_space<vmem>>, vector<16x128xf32>
      tpu.vector_store %arg10[%c0_30, %c0_31], %43 {strides = array<i32>} : memref<16x128xf32, #tpu.memory_space<vmem>>, vector<16x128xf32>,
      %45 = vector.extract_strided_slice %42 {offsets = [0, 128], sizes = [16, 128], strides = [1, 1]} : vector<16x256xf32> to vector<16x128xf32>
      %46 = arith.truncf %45 : vector<16x128xf32> to vector<16x128xbf16>
      %c0_32 = arith.constant 0 : index
      %c0_33 = arith.constant 0 : index
      %47 = vector.load %arg11[%c0_32, %c0_33] : memref<16x128xbf16, #tpu.memory_space<vmem>>, vector<16x128xbf16>
      tpu.vector_store %arg11[%c0_32, %c0_33], %46 {strides = array<i32>} : memref<16x128xbf16, #tpu.memory_space<vmem>>, vector<16x128xbf16>,
      %cst_34 = arith.constant 0.000000e+00 : f32
      %48 = vector.broadcast %cst_34 : f32 to vector<1x128xf32>
      %c0_35 = arith.constant 0 : index
      %c0_36 = arith.constant 0 : index
      %49 = vector.load %arg13[%c0_35, %c0_36] : memref<1x128xf32, #tpu.memory_space<vmem>>, vector<1x128xf32>
      tpu.vector_store %arg13[%c0_35, %c0_36], %48 {strides = array<i32>} : memref<1x128xf32, #tpu.memory_space<vmem>>, vector<1x128xf32>,
      %cst_37 = arith.constant 0.000000e+00 : f32
      %50 = vector.broadcast %cst_37 : f32 to vector<1x128xf32>
      %c0_38 = arith.constant 0 : index
      %c0_39 = arith.constant 0 : index
      %51 = vector.load %arg14[%c0_38, %c0_39] : memref<1x128xf32, #tpu.memory_space<vmem>>, vector<1x128xf32>
      tpu.vector_store %arg14[%c0_38, %c0_39], %50 {strides = array<i32>} : memref<1x128xf32, #tpu.memory_space<vmem>>, vector<1x128xf32>,
    } else {
    }
    %c16_i32 = arith.constant 16 : i32
    %8 = arith.muli %arg2, %c16_i32 : i32
    %9 = tpu.assume_multiple %8, 16 : i32
    %10 = arith.index_cast %9 : i32 to index
    %c0 = arith.constant 0 : index
    %11 = vector.load %arg10[%10, %c0] : memref<16x128xf32, #tpu.memory_space<vmem>>, vector<16x128xf32>
    %c0_4 = arith.constant 0 : index
    %c0_5 = arith.constant 0 : index
    %c0_6 = arith.constant 0 : index
    %12 = vector.load %arg4[%c0_4, %c0_5, %c0_6] : memref<1x16x16xbf16, #tpu.memory_space<vmem>>, vector<1x16x16xbf16>
    %13 = vector.shape_cast %12 : vector<1x16x16xbf16> to vector<16x16xbf16>
    %c0_7 = arith.constant 0 : index
    %c0_8 = arith.constant 0 : index
    %14 = vector.load %arg11[%c0_7, %c0_8] : memref<16x128xbf16, #tpu.memory_space<vmem>>, vector<16x128xbf16>
    %cst = arith.constant dense<0.000000e+00> : vector<16x128xf32>
    %15 = tpu.matmul %13, %14, %cst {dimension_numbers = #tpu.dot_dimension_numbers<[1], [0], [0], [1], [0, 0, 1, 1], [], []>} : vector<16x16xbf16>, vector<16x128xbf16>, vector<16x128xf32> -> vector<16x128xf32>
    %16 = arith.addf %11, %15 : vector<16x128xf32>
    %17 = arith.index_cast %9 : i32 to index
    %c0_9 = arith.constant 0 : index
    %18 = vector.load %arg12[%17, %c0_9] : memref<16x128xf32, #tpu.memory_space<vmem>>, vector<16x128xf32>
    tpu.vector_store %arg12[%17, %c0_9], %16 {strides = array<i32>} : memref<16x128xf32, #tpu.memory_space<vmem>>, vector<16x128xf32>,
    %c0_10 = arith.constant 0 : index
    %c0_11 = arith.constant 0 : index
    %19 = vector.load %arg13[%c0_10, %c0_11] : memref<1x128xf32, #tpu.memory_space<vmem>>, vector<1x128xf32>
    %cst_12 = arith.constant dense<0.000000e+00> : vector<128xf32>
    %20 = vector.multi_reduction <add>, %16, %cst_12 [0] : vector<16x128xf32> to vector<128xf32>
    %21 = vector.shape_cast %20 : vector<128xf32> to vector<1x128xf32>
    %22 = arith.addf %19, %21 : vector<1x128xf32>
    %c0_13 = arith.constant 0 : index
    %c0_14 = arith.constant 0 : index
    %23 = vector.load %arg13[%c0_13, %c0_14] : memref<1x128xf32, #tpu.memory_space<vmem>>, vector<1x128xf32>
    tpu.vector_store %arg13[%c0_13, %c0_14], %22 {strides = array<i32>} : memref<1x128xf32, #tpu.memory_space<vmem>>, vector<1x128xf32>,
    %c0_15 = arith.constant 0 : index
    %c0_16 = arith.constant 0 : index
    %24 = vector.load %arg14[%c0_15, %c0_16] : memref<1x128xf32, #tpu.memory_space<vmem>>, vector<1x128xf32>
    %25 = arith.mulf %16, %16 : vector<16x128xf32>
    %cst_17 = arith.constant dense<0.000000e+00> : vector<128xf32>
    %26 = vector.multi_reduction <add>, %25, %cst_17 [0] : vector<16x128xf32> to vector<128xf32>
    %27 = vector.shape_cast %26 : vector<128xf32> to vector<1x128xf32>
    %28 = arith.addf %24, %27 : vector<1x128xf32>
    %c0_18 = arith.constant 0 : index
    %c0_19 = arith.constant 0 : index
    %29 = vector.load %arg14[%c0_18, %c0_19] : memref<1x128xf32, #tpu.memory_space<vmem>>, vector<1x128xf32>
    tpu.vector_store %arg14[%c0_18, %c0_19], %28 {strides = array<i32>} : memref<1x128xf32, #tpu.memory_space<vmem>>, vector<1x128xf32>,
    %c0_i32_20 = arith.constant 0 : i32
    %30 = arith.cmpi eq, %arg2, %c0_i32_20 : i32
    %c2_i32 = arith.constant 2 : i32
    %31 = arith.cmpi ne, %arg1, %c2_i32 : i32
    %32 = arith.andi %30, %31 : i1
    %33 = arith.extui %32 : i1 to i32
    %c0_i32_21 = arith.constant 0 : i32
    %34 = arith.cmpi ne, %33, %c0_i32_21 : i32
    scf.if %34 {
      %c0_24 = arith.constant 0 : index
      %c0_25 = arith.constant 0 : index
      %39 = vector.load %arg13[%c0_24, %c0_25] : memref<1x128xf32, #tpu.memory_space<vmem>>, vector<1x128xf32>
      %cst_26 = arith.constant 6.250000e-02 : f32
      %40 = vector.broadcast %cst_26 : f32 to vector<1x128xf32>
      %41 = arith.mulf %39, %40 : vector<1x128xf32>
      %c0_27 = arith.constant 0 : index
      %c0_28 = arith.constant 0 : index
      %42 = vector.load %arg14[%c0_27, %c0_28] : memref<1x128xf32, #tpu.memory_space<vmem>>, vector<1x128xf32>
      %cst_29 = arith.constant 6.250000e-02 : f32
      %43 = vector.broadcast %cst_29 : f32 to vector<1x128xf32>
      %44 = arith.mulf %42, %43 : vector<1x128xf32>
      %45 = arith.mulf %41, %41 : vector<1x128xf32>
      %46 = arith.subf %44, %45 : vector<1x128xf32>
      %c0_30 = arith.constant 0 : index
      %c0_31 = arith.constant 0 : index
      %c0_32 = arith.constant 0 : index
      %47 = vector.load %arg6[%c0_30, %c0_31, %c0_32] : memref<1x1x128xf32, #tpu.memory_space<vmem>>, vector<1x1x128xf32>
      %48 = vector.shape_cast %47 : vector<1x1x128xf32> to vector<1x128xf32>
      %cst_33 = arith.constant 9.99999974E-6 : f32
      %49 = vector.broadcast %cst_33 : f32 to vector<1x128xf32>
      %50 = arith.addf %46, %49 : vector<1x128xf32>
      %51 = math.rsqrt %50 : vector<1x128xf32>
      %52 = arith.mulf %48, %51 : vector<1x128xf32>
      %c0_34 = arith.constant 0 : index
      %c0_35 = arith.constant 0 : index
      %c0_36 = arith.constant 0 : index
      %53 = vector.load %arg7[%c0_34, %c0_35, %c0_36] : memref<1x1x128xf32, #tpu.memory_space<vmem>>, vector<1x1x128xf32>
      %54 = vector.shape_cast %53 : vector<1x1x128xf32> to vector<1x128xf32>
      %55 = arith.mulf %41, %52 : vector<1x128xf32>
      %56 = arith.subf %54, %55 : vector<1x128xf32>
      %c0_37 = arith.constant 0 : index
      %c0_38 = arith.constant 0 : index
      %57 = vector.load %arg12[%c0_37, %c0_38] : memref<16x128xf32, #tpu.memory_space<vmem>>, vector<16x128xf32>
      %58 = vector.broadcast %52 : vector<1x128xf32> to vector<16x128xf32>
      %59 = arith.mulf %57, %58 : vector<16x128xf32>
      %60 = vector.broadcast %56 : vector<1x128xf32> to vector<16x128xf32>
      %61 = arith.addf %59, %60 : vector<16x128xf32>
      %cst_39 = arith.constant 0.000000e+00 : f32
      %62 = vector.broadcast %cst_39 : f32 to vector<16x128xf32>
      %63 = arith.maximumf %61, %62 : vector<16x128xf32>
      %64 = arith.truncf %63 : vector<16x128xf32> to vector<16x128xbf16>
      %c0_40 = arith.constant 0 : index
      %c0_41 = arith.constant 0 : index
      %65 = vector.load %arg9[%c0_40, %c0_41] : memref<16x128xbf16, #tpu.memory_space<vmem>>, vector<16x128xbf16>
      tpu.vector_store %arg9[%c0_40, %c0_41], %64 {strides = array<i32>} : memref<16x128xbf16, #tpu.memory_space<vmem>>, vector<16x128xbf16>,
    } else {
    }
    %c2_i32_22 = arith.constant 2 : i32
    %35 = arith.cmpi eq, %arg1, %c2_i32_22 : i32
    %36 = arith.andi %30, %35 : i1
    %37 = arith.extui %36 : i1 to i32
    %c0_i32_23 = arith.constant 0 : i32
    %38 = arith.cmpi ne, %37, %c0_i32_23 : i32
    scf.if %38 {
      %c0_24 = arith.constant 0 : index
      %c0_25 = arith.constant 0 : index
      %39 = vector.load %arg13[%c0_24, %c0_25] : memref<1x128xf32, #tpu.memory_space<vmem>>, vector<1x128xf32>
      %cst_26 = arith.constant 6.250000e-02 : f32
      %40 = vector.broadcast %cst_26 : f32 to vector<1x128xf32>
      %41 = arith.mulf %39, %40 : vector<1x128xf32>
      %c0_27 = arith.constant 0 : index
      %c0_28 = arith.constant 0 : index
      %42 = vector.load %arg14[%c0_27, %c0_28] : memref<1x128xf32, #tpu.memory_space<vmem>>, vector<1x128xf32>
      %cst_29 = arith.constant 6.250000e-02 : f32
      %43 = vector.broadcast %cst_29 : f32 to vector<1x128xf32>
      %44 = arith.mulf %42, %43 : vector<1x128xf32>
      %45 = arith.mulf %41, %41 : vector<1x128xf32>
      %46 = arith.subf %44, %45 : vector<1x128xf32>
      %c0_30 = arith.constant 0 : index
      %c0_31 = arith.constant 0 : index
      %c0_32 = arith.constant 0 : index
      %47 = vector.load %arg6[%c0_30, %c0_31, %c0_32] : memref<1x1x128xf32, #tpu.memory_space<vmem>>, vector<1x1x128xf32>
      %48 = vector.shape_cast %47 : vector<1x1x128xf32> to vector<1x128xf32>
      %cst_33 = arith.constant 9.99999974E-6 : f32
      %49 = vector.broadcast %cst_33 : f32 to vector<1x128xf32>
      %50 = arith.addf %46, %49 : vector<1x128xf32>
      %51 = math.rsqrt %50 : vector<1x128xf32>
      %52 = arith.mulf %48, %51 : vector<1x128xf32>
      %c0_34 = arith.constant 0 : index
      %c0_35 = arith.constant 0 : index
      %c0_36 = arith.constant 0 : index
      %53 = vector.load %arg7[%c0_34, %c0_35, %c0_36] : memref<1x1x128xf32, #tpu.memory_space<vmem>>, vector<1x1x128xf32>
      %54 = vector.shape_cast %53 : vector<1x1x128xf32> to vector<1x128xf32>
      %55 = arith.mulf %41, %52 : vector<1x128xf32>
      %56 = arith.subf %54, %55 : vector<1x128xf32>
      %c0_37 = arith.constant 0 : index
      %c0_38 = arith.constant 0 : index
      %57 = vector.load %arg12[%c0_37, %c0_38] : memref<16x128xf32, #tpu.memory_space<vmem>>, vector<16x128xf32>
      %58 = vector.broadcast %52 : vector<1x128xf32> to vector<16x128xf32>
      %59 = arith.mulf %57, %58 : vector<16x128xf32>
      %60 = vector.broadcast %56 : vector<1x128xf32> to vector<16x128xf32>
      %61 = arith.addf %59, %60 : vector<16x128xf32>
      %c0_39 = arith.constant 0 : index
      %c0_40 = arith.constant 0 : index
      %c0_41 = arith.constant 0 : index
      %62 = vector.load %arg8[%c0_39, %c0_40, %c0_41] : memref<1x16x128xf32, #tpu.memory_space<vmem>>, vector<1x16x128xf32>
      %63 = vector.shape_cast %62 : vector<1x16x128xf32> to vector<16x128xf32>
      %64 = vector.shape_cast %61 : vector<16x128xf32> to vector<1x16x128xf32>
      tpu.vector_store %arg8[%c0_39, %c0_40, %c0_41], %64 {strides = array<i32>} : memref<1x16x128xf32, #tpu.memory_space<vmem>>, vector<1x16x128xf32>,
    } else {
    }
    return
  }
  func.func @transform_0(%arg0: i32, %arg1: i32, %arg2: i32) -> (i32, i32) {
    %c0_i32 = arith.constant 0 : i32
    %c0_i32_0 = arith.constant 0 : i32
    %c0_i32_1 = arith.constant 0 : i32
    return %c0_i32, %c0_i32_0 : i32, i32
  }
  func.func @transform_1(%arg0: i32, %arg1: i32, %arg2: i32) -> (i32, i32, i32) {
    %c0_i32 = arith.constant 0 : i32
    %c0_i32_0 = arith.constant 0 : i32
    return %arg0, %arg2, %c0_i32 : i32, i32, i32
  }
  func.func @transform_2(%arg0: i32, %arg1: i32, %arg2: i32) -> (i32, i32, i32) {
    %c3_i32 = arith.constant 3 : i32
    %0 = arith.muli %arg0, %c3_i32 : i32
    %1 = arith.addi %0, %arg1 : i32
    %c0_i32 = arith.constant 0 : i32
    %c0_i32_0 = arith.constant 0 : i32
    %c0_i32_1 = arith.constant 0 : i32
    return %1, %c0_i32, %c0_i32_0 : i32, i32, i32
  }
  func.func @transform_3(%arg0: i32, %arg1: i32, %arg2: i32) -> (i32, i32, i32) {
    %c3_i32 = arith.constant 3 : i32
    %0 = arith.muli %arg0, %c3_i32 : i32
    %1 = arith.addi %0, %arg1 : i32
    %c0_i32 = arith.constant 0 : i32
    %c0_i32_0 = arith.constant 0 : i32
    %c0_i32_1 = arith.constant 0 : i32
    return %1, %c0_i32, %c0_i32_0 : i32, i32, i32
  }
  func.func @transform_4(%arg0: i32, %arg1: i32, %arg2: i32) -> (i32, i32, i32) {
    %c3_i32 = arith.constant 3 : i32
    %0 = arith.muli %arg0, %c3_i32 : i32
    %1 = arith.addi %0, %arg1 : i32
    %c0_i32 = arith.constant 0 : i32
    %c0_i32_0 = arith.constant 0 : i32
    %c0_i32_1 = arith.constant 0 : i32
    return %1, %c0_i32, %c0_i32_0 : i32, i32, i32
  }
  func.func @transform_5(%arg0: i32, %arg1: i32, %arg2: i32) -> (i32, i32, i32) {
    %c0_i32 = arith.constant 0 : i32
    %c0_i32_0 = arith.constant 0 : i32
    %c0_i32_1 = arith.constant 0 : i32
    return %arg0, %c0_i32, %c0_i32_0 : i32, i32, i32
  }
}

</mosaic_0001>

<llo_original>
// kernel: tpu_custom_call.1
$region0: #{tpu_custom_call.1}
  #allocation0 [shape = 'u32[]', space=smem, size = 0x4, offset = 0x4, fixed_abs, tag = 'smem constant byte address 0x4 - core index']
  #allocation1 [shape = 'u32[144,128]{1,0:T(1,128)}', space=vmem, size = 0x12000, scoped, tag = 'internal scratch']
  #allocation2 [shape = 'bf16[16,128]{1,0:T(8,128)(2,1)}', space=vmem, size = 0x1000, scoped, tag = 'scratch operand']
  #allocation3 [shape = 'f32[16,128]{1,0:T(8,128)}', space=vmem, size = 0x2000, scoped, tag = 'scratch operand']
  #allocation4 [shape = 'bf16[16,128]{1,0:T(8,128)(2,1)}', space=vmem, size = 0x1000, scoped, tag = 'scratch operand']
  #allocation5 [shape = 'f32[16,128]{1,0:T(8,128)}', space=vmem, size = 0x2000, scoped, tag = 'scratch operand']
  #allocation6 [shape = 'f32[1,128]{1,0:T(1,128)}', space=vmem, size = 0x200, scoped, tag = 'scratch operand']
  #allocation7 [shape = 'f32[1,128]{1,0:T(1,128)}', space=vmem, size = 0x200, scoped, tag = 'scratch operand']
  %s0 = inlined_call_operand.hbm [shape: f32[16,128], index: 0, kind: input, shape index: {}]
  %s1 = inlined_call_operand.hbm [shape: bf16[2,16,16], index: 1, kind: input, shape index: {}]
  %s2 = inlined_call_operand.hbm [shape: bf16[6,128,256], index: 2, kind: input, shape index: {}]
  %s3 = inlined_call_operand.hbm [shape: f32[6,1,128], index: 3, kind: input, shape index: {}]
  %s4 = inlined_call_operand.vmem [shape: f32[6,1,128], index: 4, kind: input, shape index: {}]
  %s5 = inlined_call_operand.hbm [shape: f32[2,16,128], index: 5, kind: output, shape index: {}]
  %s6 = sld [smem:[#allocation0]]
  $region85: #{tpu_custom_call.1} parent=0
    _
  %s8 = ssub.s32 1, %s6
  %s9 = scalar_select 0, %s8, %s6
  $region1: #{tpu_custom_call.1} parent=0
    #allocation8 [shape = 'u8[8192]{0}', space=vmem, size = 0x2000, scoped, tag = 'input window, operand 0, single buffered']
    #allocation9 [shape = 's32[2]{0}', space=sflag, size = 0x8, scoped, tag = 'scoped memory for tpu_custom_call.1']
    #allocation10 [shape = 's32[2]{0}', space=sflag, size = 0x8, scoped, tag = 'scoped memory for tpu_custom_call.1']
    #allocation11 [shape = 'u8[8192]{0}', space=vmem, size = 0x2000, scoped, tag = 'input window, operand 1']
    #allocation12 [shape = 's32[2]{0}', space=sflag, size = 0x8, scoped, tag = 'scoped memory for tpu_custom_call.1']
    #allocation13 [shape = 'u8[131072]{0}', space=vmem, size = 0x20000, scoped, tag = 'input window, operand 2']
    #allocation14 [shape = 'u8[1024]{0}', space=vmem, size = 0x400, scoped, tag = 'input window, operand 3']
    #allocation15 [shape = 's32[2]{0}', space=sflag, size = 0x8, scoped, tag = 'scoped memory for tpu_custom_call.1']
    #allocation16 [shape = 'u8[16384]{0}', space=vmem, size = 0x4000, scoped, tag = 'output window, operand 0']
    %10 = vsyncpa [#allocation9], 0
    %11 = vsyncpa [#allocation12], 0
    %s12 = scalar_lea.sflag [#allocation12], 1
    %13 = vsyncpa %s12, 0
    %14 = vsyncpa [#allocation15], 0
    %s15 = scalar_lea.sflag [#allocation15], 1
    %16 = vsyncpa %s15, 0
    %17 = vsyncpa [#allocation10], 0
    %s18 = scalar_lea.sflag [#allocation10], 1
    %19 = vsyncpa %s18, 0
    loop: start=0, step=1, limit=8
    $region2: #{tpu_custom_call.1} parent=1 // loop_pre_header
      _
    $region3: #{tpu_custom_call.1} parent=1 // loop_header
      %s21 = sphi 0, %s25
      %p22 = scmp.ge.s32.totalorder %s21, 8
      %s28 = sphi 0, %s47
      %s29 = sphi 0, %s43
      %s30 = sphi 0, %s39
      %s31 = sphi 0, %s28
      %s32 = sphi 0, %s29
      %s33 = sphi 0, %s30
      %s34 = sphi 0, %s31
      %s35 = sphi 0, %s32
      %s36 = sphi 0, %s33
      %s48 = sphi 0, %s48
      %s50 = sphi 0, %s48
      %s51 = sphi 0, %s50
      %s65 = sphi 0, %s51
      %s73 = sphi 0, %s75
      %s76 = sphi 0, %s73
      %s77 = sphi 0, %s76
      %s93 = sphi 0, %s77
      %s103 = sphi 0, %s105
      %s106 = sphi 0, %s103
      %s107 = sphi 0, %s106
      %s123 = sphi 0, %s107
      %s133 = sphi 0, %s135
      %s136 = sphi 0, %s133
      %s137 = sphi 0, %s136
      %s153 = sphi 0, %s137
      %s163 = sphi 0, %s165
      %s166 = sphi 0, %s163
      %s167 = sphi 0, %s166
      %s183 = sphi 0, %s167
      %s189 = sphi 0, %s191
      %s192 = sphi 0, %s189
      %s193 = sphi 0, %s192
      %s209 = sphi 0, %s193
    $region4: #{tpu_custom_call.1} parent=1 // loop_header_branch
      %24 = sbr.rel (%p22) target = $region8
    $region5: #{tpu_custom_call.1} parent=1 // loop_body
      %s26 = ssub.s32 %s21, 1
      %s27 = ssub.s32 %s21, 2
      %s37 = sadd.s32 1, %s30
      %p38 = scmp.ge.s32.totalorder %s37, 1
      %s39 = scalar_select %p38, 0, %s37
      %s40 = sadd.s32 1, %s29
      %s41 = scalar_select %p38, %s40, %s29
      %p42 = scmp.ge.s32.totalorder %s41, 3
      %s43 = scalar_select %p42, 0, %s41
      %s44 = sadd.s32 1, %s28
      %s45 = scalar_select %p42, %s44, %s28
      %p46 = scmp.ge.s32.totalorder %s45, 2
      %s47 = scalar_select %p46, 0, %s45
      %s49 = sadd.s32 %s48, 1
      %p52 = scmp.eq.s32.totalorder %s21, 5
      %p53 = scmp.ne.s32.totalorder %s48, %s50
      %p54 = scmp.eq.s32.totalorder %s21, 0
      %p55 = por %p53, %p54
      %p56 = scmp.ne.s32.totalorder %s48, %s50
      %p57 = scmp.eq.s32.totalorder %s26, 5
      %p58 = por %p56, %p57
      %p59 = scmp.ne.s32.totalorder %s50, %s51
      %p60 = scmp.eq.s32.totalorder %s26, 0
      %p61 = por %p59, %p60
      %p62 = scmp.ne.s32.totalorder %s50, %s51
      %p63 = scmp.eq.s32.totalorder %s27, 5
      %p64 = por %p62, %p63
      %p66 = scmp.ne.s32.totalorder %s51, %s65
      %p67 = scmp.eq.s32.totalorder %s27, 0
      %p68 = por %p66, %p67
      %s69 = ssub.s32 %s28, %s47
      %s70 = ssub.s32 %s30, %s39
      %s71 = sor.u32 %s69, %s70
      %p72 = scmp.eq.s32.totalorder %s71, 0
      %s74 = sadd.s32 %s73, 1
      %s75 = scalar_select %p72, %s73, %s74
      %p78 = pneg %p72
      %p79 = scmp.eq.s32.totalorder %s21, 5
      %p80 = por %p78, %p79
      %p81 = scmp.ne.s32.totalorder %s73, %s76
      %p82 = scmp.eq.s32.totalorder %s21, 0
      %p83 = por %p81, %p82
      %p84 = scmp.ne.s32.totalorder %s73, %s76
      %p85 = scmp.eq.s32.totalorder %s26, 5
      %p86 = por %p84, %p85
      %p87 = scmp.ne.s32.totalorder %s76, %s77
      %p88 = scmp.eq.s32.totalorder %s26, 0
      %p89 = por %p87, %p88
      %p90 = scmp.ne.s32.totalorder %s76, %s77
      %p91 = scmp.eq.s32.totalorder %s27, 5
      %p92 = por %p90, %p91
      %p94 = scmp.ne.s32.totalorder %s77, %s93
      %p95 = scmp.eq.s32.totalorder %s27, 0
      %p96 = por %p94, %p95
      %s97 = smul.u32 %s28, 3
      %s98 = sadd.s32 %s97, %s29
      %s99 = smul.u32 %s47, 3
      %s100 = sadd.s32 %s99, %s43
      %s101 = ssub.s32 %s98, %s100
      %p102 = scmp.eq.s32.totalorder %s101, 0
      %s104 = sadd.s32 %s103, 1
      %s105 = scalar_select %p102, %s103, %s104
      %p108 = pneg %p102
      %p109 = scmp.eq.s32.totalorder %s21, 5
      %p110 = por %p108, %p109
      %p111 = scmp.ne.s32.totalorder %s103, %s106
      %p112 = scmp.eq.s32.totalorder %s21, 0
      %p113 = por %p111, %p112
      %p114 = scmp.ne.s32.totalorder %s103, %s106
      %p115 = scmp.eq.s32.totalorder %s26, 5
      %p116 = por %p114, %p115
      %p117 = scmp.ne.s32.totalorder %s106, %s107
      %p118 = scmp.eq.s32.totalorder %s26, 0
      %p119 = por %p117, %p118
      %p120 = scmp.ne.s32.totalorder %s106, %s107
      %p121 = scmp.eq.s32.totalorder %s27, 5
      %p122 = por %p120, %p121
      %p124 = scmp.ne.s32.totalorder %s107, %s123
      %p125 = scmp.eq.s32.totalorder %s27, 0
      %p126 = por %p124, %p125
      %s127 = smul.u32 %s28, 3
      %s128 = sadd.s32 %s127, %s29
      %s129 = smul.u32 %s47, 3
      %s130 = sadd.s32 %s129, %s43
      %s131 = ssub.s32 %s128, %s130
      %p132 = scmp.eq.s32.totalorder %s131, 0
      %s134 = sadd.s32 %s133, 1
      %s135 = scalar_select %p132, %s133, %s134
      %p138 = pneg %p132
      %p139 = scmp.eq.s32.totalorder %s21, 5
      %p140 = por %p138, %p139
      %p141 = scmp.ne.s32.totalorder %s133, %s136
      %p142 = scmp.eq.s32.totalorder %s21, 0
      %p143 = por %p141, %p142
      %p144 = scmp.ne.s32.totalorder %s133, %s136
      %p145 = scmp.eq.s32.totalorder %s26, 5
      %p146 = por %p144, %p145
      %p147 = scmp.ne.s32.totalorder %s136, %s137
      %p148 = scmp.eq.s32.totalorder %s26, 0
      %p149 = por %p147, %p148
      %p150 = scmp.ne.s32.totalorder %s136, %s137
      %p151 = scmp.eq.s32.totalorder %s27, 5
      %p152 = por %p150, %p151
      %p154 = scmp.ne.s32.totalorder %s137, %s153
      %p155 = scmp.eq.s32.totalorder %s27, 0
      %p156 = por %p154, %p155
      %s157 = smul.u32 %s28, 3
      %s158 = sadd.s32 %s157, %s29
      %s159 = smul.u32 %s47, 3
      %s160 = sadd.s32 %s159, %s43
      %s161 = ssub.s32 %s158, %s160
      %p162 = scmp.eq.s32.totalorder %s161, 0
      %s164 = sadd.s32 %s163, 1
      %s165 = scalar_select %p162, %s163, %s164
      %p168 = pneg %p162
      %p169 = scmp.eq.s32.totalorder %s21, 5
      %p170 = por %p168, %p169
      %p171 = scmp.ne.s32.totalorder %s163, %s166
      %p172 = scmp.eq.s32.totalorder %s21, 0
      %p173 = por %p171, %p172
      %p174 = scmp.ne.s32.totalorder %s163, %s166
      %p175 = scmp.eq.s32.totalorder %s26, 5
      %p176 = por %p174, %p175
      %p177 = scmp.ne.s32.totalorder %s166, %s167
      %p178 = scmp.eq.s32.totalorder %s26, 0
      %p179 = por %p177, %p178
      %p180 = scmp.ne.s32.totalorder %s166, %s167
      %p181 = scmp.eq.s32.totalorder %s27, 5
      %p182 = por %p180, %p181
      %p184 = scmp.ne.s32.totalorder %s167, %s183
      %p185 = scmp.eq.s32.totalorder %s27, 0
      %p186 = por %p184, %p185
      %s187 = ssub.s32 %s28, %s47
      %p188 = scmp.eq.s32.totalorder %s187, 0
      %s190 = sadd.s32 %s189, 1
      %s191 = scalar_select %p188, %s189, %s190
      %p194 = pneg %p188
      %p195 = scmp.eq.s32.totalorder %s21, 5
      %p196 = por %p194, %p195
      %p197 = scmp.ne.s32.totalorder %s189, %s192
      %p198 = scmp.eq.s32.totalorder %s21, 0
      %p199 = por %p197, %p198
      %p200 = scmp.ne.s32.totalorder %s189, %s192
      %p201 = scmp.eq.s32.totalorder %s26, 5
      %p202 = por %p200, %p201
      %p203 = scmp.ne.s32.totalorder %s192, %s193
      %p204 = scmp.eq.s32.totalorder %s26, 0
      %p205 = por %p203, %p204
      %p206 = scmp.ne.s32.totalorder %s192, %s193
      %p207 = scmp.eq.s32.totalorder %s27, 5
      %p208 = por %p206, %p207
      %p210 = scmp.ne.s32.totalorder %s193, %s209
      %p211 = scmp.eq.s32.totalorder %s27, 0
      %p212 = por %p210, %p211
      %p213 = scmp.le.s32.totalorder 1, %s21
      %p214 = scmp.lt.s32.totalorder %s21, 7
      %p215 = pnand %p213, %p214
      %p216 = pneg %p215
      // Predicated region
      $region9: #{tpu_custom_call.1} parent=5 // pred_check
        _
      $region10: #{tpu_custom_call.1} parent=5 // pred_check_branch
        %218 = sbr.rel (%p215) target = $region12
      $region11: #{tpu_custom_call.1} parent=5 // pred_region
        %s219 = ssub.s32 %s21, 1
        // Predicated region
        $region13: #{tpu_custom_call.1} parent=11 // pred_check
          %p220 = pneg %p61
        $region14: #{tpu_custom_call.1} parent=11 // pred_check_branch
          %222 = sbr.rel (%p220) target = $region16
        $region15: #{tpu_custom_call.1} parent=11 // pred_region
          %s224 = ssub.s32 256, 256
          %225 = vsyncadd [#allocation9], %s224
          %s226 = sshll.u32 [#allocation8], 4
          %s227 = int_to_ptr.vmem [resolvable:$true] %s226
          %232 = dma.hbm_to_vmem [thread:$0]  %s0, 256, %s227, [#allocation9], 128, 128, 8
        $region16: #{tpu_custom_call.1} parent=11 // pred_fallthru
          _
      $region12: #{tpu_custom_call.1} parent=5 // pred_fallthru
        _
      %p233 = scmp.lt.s32.totalorder %s21, 6
      // Predicated region
      $region17: #{tpu_custom_call.1} parent=5 // pred_check
        %p234 = pneg %p233
      $region18: #{tpu_custom_call.1} parent=5 // pred_check_branch
        %236 = sbr.rel (%p234) target = $region20
      $region19: #{tpu_custom_call.1} parent=5 // pred_region
        // Predicated region
        $region21: #{tpu_custom_call.1} parent=19 // pred_check
          %p237 = pneg %p83
        $region22: #{tpu_custom_call.1} parent=19 // pred_check_branch
          %239 = sbr.rel (%p237) target = $region24
        $region23: #{tpu_custom_call.1} parent=19 // pred_region
          %s240 = sand.u32 %s21, 1
          %s241 = scalar_lea.sflag [#allocation12], %s240
          %s242 = sand.u32 %s73, 1
          %s243 = smul.addr %s242, 8
          %s244 = scalar_lea.vmem [#allocation11], %s243
          %s245 = smul.u32 2, %s30
          %s247 = ssub.s32 128, 128
          %248 = vsyncadd %s241, %s247
          %s249 = smul.addr %s28, 2
          %s250 = sadd.s32 %s245, %s249
          %s251 = smul.addr %s250, 64
          %s252 = scalar_lea.hbm %s1, %s251
          %s253 = sshll.u32 %s244, 4
          %s254 = int_to_ptr.vmem [resolvable:$true] %s253
          %259 = dma.hbm_to_vmem [thread:$0]  %s252, 128, %s254, %s241, 64, 64, 4
        $region24: #{tpu_custom_call.1} parent=19 // pred_fallthru
          _
        // Predicated region
        $region25: #{tpu_custom_call.1} parent=19 // pred_check
          %p260 = pneg %p113
        $region26: #{tpu_custom_call.1} parent=19 // pred_check_branch
          %262 = sbr.rel (%p260) target = $region28
        $region27: #{tpu_custom_call.1} parent=19 // pred_region
          %s263 = sand.u32 %s21, 1
          %s264 = scalar_lea.sflag [#allocation12], %s263
          %s265 = sand.u32 %s103, 1
          %s266 = smul.addr %s265, 128
          %s267 = scalar_lea.vmem [#allocation13], %s266
          %s268 = smul.u32 %s28, 3
          %s269 = sadd.s32 %s268, %s29
          %s271 = ssub.s32 2048, 2048
          %272 = vsyncadd %s264, %s271
          %s273 = smul.addr %s269, 32
          %s274 = smul.addr %s273, 64
          %s275 = scalar_lea.hbm %s2, %s274
          %s276 = sshll.u32 %s267, 4
          %s277 = int_to_ptr.vmem [resolvable:$true] %s276
          %282 = dma.hbm_to_vmem [thread:$0]  %s275, 2048, %s277, %s264, 128, 128, 8
        $region28: #{tpu_custom_call.1} parent=19 // pred_fallthru
          _
        // Predicated region
        $region29: #{tpu_custom_call.1} parent=19 // pred_check
          %p283 = pneg %p143
        $region30: #{tpu_custom_call.1} parent=19 // pred_check_branch
          %285 = sbr.rel (%p283) target = $region32
        $region31: #{tpu_custom_call.1} parent=19 // pred_region
          %s286 = sand.u32 %s133, 1
          %s287 = scalar_lea.sflag [#allocation15], %s286
          %s288 = sand.u32 %s133, 1
          %s289 = scalar_lea.vmem [#allocation14], %s288
          %s290 = smul.u32 %s28, 3
          %s291 = sadd.s32 %s290, %s29
          %s293 = ssub.s32 16, 16
          %294 = vsyncadd %s287, %s293
          %s295 = smul.addr %s291, 16
          %s296 = scalar_lea.hbm %s3, %s295
          %s298 = sshll.u32 %s289, 4
          %s299 = int_to_ptr.vmem [resolvable:$true] %s298
          %301 = dma.hbm_to_vmem [thread:$0]  %s296, 16, %s299, %s287
        $region32: #{tpu_custom_call.1} parent=19 // pred_fallthru
          _
        // Predicated region
        $region33: #{tpu_custom_call.1} parent=19 // pred_check
          %p302 = pneg %p173
        $region34: #{tpu_custom_call.1} parent=19 // pred_check_branch
          %304 = sbr.rel (%p302) target = $region36
        $region35: #{tpu_custom_call.1} parent=19 // pred_region
          %s305 = smul.u32 %s28, 3
          %s306 = sadd.s32 %s305, %s29
          %p307 = scmp.lt.s32.totalorder %s306, 5
          %s308 = scalar_select %p307, %s306, 5
          %s309 = scalar_lea.vmem %s4, %s308
          %s310 = smul.u32 %s28, 3
          %s311 = sadd.s32 %s310, %s29
        $region36: #{tpu_custom_call.1} parent=19 // pred_fallthru
          _
      $region20: #{tpu_custom_call.1} parent=5 // pred_fallthru
        _
      %p312 = scmp.le.s32.totalorder 1, %s21
      %p313 = scmp.lt.s32.totalorder %s21, 7
      %p314 = pnand %p312, %p313
      %p315 = pneg %p314
      // Predicated region
      $region37: #{tpu_custom_call.1} parent=5 // pred_check
        _
      $region38: #{tpu_custom_call.1} parent=5 // pred_check_branch
        %317 = sbr.rel (%p314) target = $region40
      $region39: #{tpu_custom_call.1} parent=5 // pred_region
        %s318 = ssub.s32 %s21, 1
        // Predicated region
        $region41: #{tpu_custom_call.1} parent=39 // pred_check
          %p319 = pneg %p61
        $region42: #{tpu_custom_call.1} parent=39 // pred_check_branch
          %321 = sbr.rel (%p319) target = $region44
        $region43: #{tpu_custom_call.1} parent=39 // pred_region
          %322 = dma.done [#allocation9], 256
        $region44: #{tpu_custom_call.1} parent=39 // pred_fallthru
          _
        %s323 = sand.u32 %s26, 1
        %s324 = scalar_lea.sflag [#allocation12], %s323
        %s325 = sand.u32 %s76, 1
        %s326 = smul.addr %s325, 8
        %s327 = scalar_lea.vmem [#allocation11], %s326
        // Predicated region
        $region45: #{tpu_custom_call.1} parent=39 // pred_check
          %p328 = pneg %p89
        $region46: #{tpu_custom_call.1} parent=39 // pred_check_branch
          %330 = sbr.rel (%p328) target = $region48
        $region47: #{tpu_custom_call.1} parent=39 // pred_region
          %331 = dma.done %s324, 128
        $region48: #{tpu_custom_call.1} parent=39 // pred_fallthru
          _
        %s332 = sand.u32 %s26, 1
        %s333 = scalar_lea.sflag [#allocation12], %s332
        %s334 = sand.u32 %s106, 1
        %s335 = smul.addr %s334, 128
        %s336 = scalar_lea.vmem [#allocation13], %s335
        // Predicated region
        $region49: #{tpu_custom_call.1} parent=39 // pred_check
          %p337 = pneg %p119
        $region50: #{tpu_custom_call.1} parent=39 // pred_check_branch
          %339 = sbr.rel (%p337) target = $region52
        $region51: #{tpu_custom_call.1} parent=39 // pred_region
          %340 = dma.done %s333, 2048
        $region52: #{tpu_custom_call.1} parent=39 // pred_fallthru
          _
        %s341 = sand.u32 %s136, 1
        %s342 = scalar_lea.sflag [#allocation15], %s341
        %s343 = sand.u32 %s136, 1
        %s344 = scalar_lea.vmem [#allocation14], %s343
        // Predicated region
        $region53: #{tpu_custom_call.1} parent=39 // pred_check
          %p345 = pneg %p149
        $region54: #{tpu_custom_call.1} parent=39 // pred_check_branch
          %347 = sbr.rel (%p345) target = $region56
        $region55: #{tpu_custom_call.1} parent=39 // pred_region
          %348 = dma.done %s342, 16
        $region56: #{tpu_custom_call.1} parent=39 // pred_fallthru
          _
        %p349 = pneg %p61
        %p350 = pneg %p58
        %s351 = sand.u32 %s26, 1
        %s352 = scalar_lea.sflag [#allocation12], %s351
        %s353 = sand.u32 %s76, 1
        %s354 = smul.addr %s353, 8
        %s355 = scalar_lea.vmem [#allocation11], %s354
        %p356 = pneg %p89
        %p357 = pneg %p86
        %s358 = sand.u32 %s26, 1
        %s359 = scalar_lea.sflag [#allocation12], %s358
        %s360 = sand.u32 %s106, 1
        %s361 = smul.addr %s360, 128
        %s362 = scalar_lea.vmem [#allocation13], %s361
        %p363 = pneg %p119
        %p364 = pneg %p116
        %s365 = sand.u32 %s136, 1
        %s366 = scalar_lea.sflag [#allocation15], %s365
        %s367 = sand.u32 %s136, 1
        %s368 = scalar_lea.vmem [#allocation14], %s367
        %p369 = pneg %p149
        %p370 = pneg %p146
        %s371 = smul.u32 %s31, 3
        %s372 = sadd.s32 %s371, %s32
        %p373 = scmp.lt.s32.totalorder %s372, 5
        %s374 = scalar_select %p373, %s372, 5
        %s375 = scalar_lea.vmem %s4, %s374
        %p376 = pneg %p179
        %p377 = pneg %p176
        %p378 = pneg %p205
        %p379 = pneg %p202
        %s380 = sand.u32 %s192, 1
        %s381 = scalar_lea.sflag [#allocation10], %s380
        %s382 = sand.u32 %s192, 1
        %s383 = smul.addr %s382, 16
        %s384 = scalar_lea.vmem [#allocation16], %s383
        %s385 = smul.u32 2, %s33
        %s386 = smul.u32 %s31, 3
        %s387 = sadd.s32 %s386, %s32
        %s388 = smul.u32 %s31, 3
        %s389 = sadd.s32 %s388, %s32
        %s390 = smul.u32 %s31, 3
        %s391 = sadd.s32 %s390, %s32
        %p392 = scmp.lt.s32.totalorder %s391, 5
        %s393 = scalar_select %p392, %s391, 5
        %s394 = scalar_lea.vmem %s4, %s393
        %s395 = smul.u32 %s31, 3
        %s396 = sadd.s32 %s395, %s32
        %p398 = scmp.eq.s32.totalorder %s32, 0
        %p399 = scmp.eq.s32.totalorder %s33, 0
        %p400 = pnand %p398, %p399
        %p401 = pneg %p400
        // Predicated region
        $region57: #{tpu_custom_call.1} parent=39 // pred_check
          _
        $region58: #{tpu_custom_call.1} parent=39 // pred_check_branch
          %403 = sbr.rel (%p400) target = $region60
        $region59: #{tpu_custom_call.1} parent=39 // pred_region
          %v404 = vld [vmem:[#allocation8] sm:$0xff]
          %v405 = vld [vmem:[#allocation8 + $0x8] sm:$0xff]
          %v406 = vpack.c.bf16 %v405, %v404
          %v408 = vunpack.c.l.b16 %v406
          %v409 = vunpack.c.h.b16 %v406
          %v410 = vpack.c.b16 %v408, %v408
          %v411 = vpack.c.b16 %v409, %v409
          %414 = vst [vmem:[#allocation2] sm:$0xf] %v410
          %415 = vst [vmem:[#allocation2 + $0x4] sm:$0xf] %v411
        $region60: #{tpu_custom_call.1} parent=39 // pred_fallthru
          _
        // Predicated region
        $region61: #{tpu_custom_call.1} parent=39 // pred_check
          %p416 = pneg %p399
        $region62: #{tpu_custom_call.1} parent=39 // pred_check_branch
          %418 = sbr.rel (%p416) target = $region64
        $region63: #{tpu_custom_call.1} parent=39 // pred_region
          %v419 = vld [vmem:[#allocation2] sm:$0xf]
          %v420 = vld [vmem:[#allocation2 + $0x4] sm:$0xf]
          %v421 = vld [vmem:[%s336] sm:$0xff]
          %v422 = vld [vmem:[%s336 + $0x8] sm:$0xff]
          %v423 = vld [vmem:[%s336 + $0x10] sm:$0xff]
          %v424 = vld [vmem:[%s336 + $0x18] sm:$0xff]
          %v425 = vld [vmem:[%s336 + $0x20] sm:$0xff]
          %v426 = vld [vmem:[%s336 + $0x28] sm:$0xff]
          %v427 = vld [vmem:[%s336 + $0x30] sm:$0xff]
          %v428 = vld [vmem:[%s336 + $0x38] sm:$0xff]
          %v429 = vld [vmem:[%s336 + $0x40] sm:$0xff]
          %v430 = vld [vmem:[%s336 + $0x48] sm:$0xff]
          %v431 = vld [vmem:[%s336 + $0x50] sm:$0xff]
          %v432 = vld [vmem:[%s336 + $0x58] sm:$0xff]
          %v433 = vld [vmem:[%s336 + $0x60] sm:$0xff]
          %v434 = vld [vmem:[%s336 + $0x68] sm:$0xff]
          %v435 = vld [vmem:[%s336 + $0x70] sm:$0xff]
          %v436 = vld [vmem:[%s336 + $0x78] sm:$0xff]
          %v439 = vunpack.c.l.b16 %v419
          %v440 = vunpack.c.l.b16 %v420
          %v441 = vpack.c.b16 %v440, %v439
          %v459 = vunpack.c.l.b16 %v421
          %v460 = vunpack.c.h.b16 %v421
          %v461 = vunpack.c.l.b16 %v422
          %v462 = vunpack.c.h.b16 %v422
          %v463 = vunpack.c.l.b16 %v423
          %v464 = vunpack.c.h.b16 %v423
          %v465 = vunpack.c.l.b16 %v424
          %v466 = vunpack.c.h.b16 %v424
          %v467 = vunpack.c.l.b16 %v425
          %v468 = vunpack.c.h.b16 %v425
          %v469 = vunpack.c.l.b16 %v426
          %v470 = vunpack.c.h.b16 %v426
          %v471 = vunpack.c.l.b16 %v427
          %v472 = vunpack.c.h.b16 %v427
          %v473 = vunpack.c.l.b16 %v428
          %v474 = vunpack.c.h.b16 %v428
          %v475 = vunpack.c.l.b16 %v429
          %v476 = vunpack.c.h.b16 %v429
          %v477 = vunpack.c.l.b16 %v430
          %v478 = vunpack.c.h.b16 %v430
          %v479 = vunpack.c.l.b16 %v431
          %v480 = vunpack.c.h.b16 %v431
          %v481 = vunpack.c.l.b16 %v432
          %v482 = vunpack.c.h.b16 %v432
          %v483 = vunpack.c.l.b16 %v433
          %v484 = vunpack.c.h.b16 %v433
          %v485 = vunpack.c.l.b16 %v434
          %v486 = vunpack.c.h.b16 %v434
          %v487 = vunpack.c.l.b16 %v435
          %v488 = vunpack.c.h.b16 %v435
          %v489 = vunpack.c.l.b16 %v436
          %v490 = vunpack.c.h.b16 %v436
          %v491 = vpack.c.b16 %v461, %v459
          %v492 = vpack.c.b16 %v462, %v460
          %v493 = vpack.c.b16 %v465, %v463
          %v494 = vpack.c.b16 %v466, %v464
          %v495 = vpack.c.b16 %v469, %v467
          %v496 = vpack.c.b16 %v470, %v468
          %v497 = vpack.c.b16 %v473, %v471
          %v498 = vpack.c.b16 %v474, %v472
          %v499 = vpack.c.b16 %v477, %v475
          %v500 = vpack.c.b16 %v478, %v476
          %v501 = vpack.c.b16 %v481, %v479
          %v502 = vpack.c.b16 %v482, %v480
          %v503 = vpack.c.b16 %v485, %v483
          %v504 = vpack.c.b16 %v486, %v484
          %v505 = vpack.c.b16 %v489, %v487
          %v506 = vpack.c.b16 %v490, %v488
          %523 = vmatprep.subr.bf16.mxu0 %v506
          %524 = vmatpush1.bf16.msra.mxu0 %v505
          %525 = vmatprep.subr.bf16.mxu0 %v504
          %526 = vmatpush1.bf16.msra.mxu0 %v503
          %527 = vmatprep.subr.bf16.mxu0 %v502
          %528 = vmatpush1.bf16.msra.mxu0 %v501
          %529 = vmatprep.subr.bf16.mxu0 %v500
          %530 = vmatpush1.bf16.msra.mxu0 %v499
          %531 = vmatprep.subr.bf16.mxu0 %v498
          %532 = vmatpush1.bf16.msra.mxu0 %v497
          %533 = vmatprep.subr.bf16.mxu0 %v496
          %534 = vmatpush1.bf16.msra.mxu0 %v495
          %535 = vmatprep.subr.bf16.mxu0 %v494
          %536 = vmatpush1.bf16.msra.mxu0 %v493
          %537 = vmatprep.subr.bf16.mxu0 %v492
          %538 = vmatpush1.bf16.msra.mxu0 %v491
          %539 = vmatprep.subr.bf16.mxu0 0
          %540 = vmatpush2.bf16.msra.mxu0 0
          %541 = vmatprep.subr.bf16.mxu0 0
          %542 = vmatpush2.bf16.msra.mxu0 0
          %543 = vmatprep.subr.bf16.mxu0 0
          %544 = vmatpush2.bf16.msra.mxu0 0
          %545 = vmatprep.subr.bf16.mxu0 0
          %546 = vmatpush2.bf16.msra.mxu0 0
          %547 = vmatprep.subr.bf16.mxu0 0
          %548 = vmatpush2.bf16.msra.mxu0 0
          %549 = vmatprep.subr.bf16.mxu0 0
          %550 = vmatpush2.bf16.msra.mxu0 0
          %551 = vmatprep.subr.bf16.mxu0 0
          %552 = vmatpush2.bf16.msra.mxu0 0
          %553 = vmatprep.subr.bf16.mxu0 0
          %554 = vmatpush2.bf16.msra.mxu0 0
          %555 = vmatprep.mubr.bf16.mxu0 0
          %556 = vmatmul.mubr.bf16.gmra.mxu0 %v441
          %v557 = vpop.f32.mrf.mxu0
          %v558 = vadd.f32 0.0, %v557
          %v559 = vpop.f32.mrf.mxu0
          %v560 = vadd.f32 0.0, %v559
          %v561 = vpop.f32.mrf.mxu0
          %v562 = vadd.f32 0.0, %v561
          %v563 = vpop.f32.mrf.mxu0
          %v564 = vadd.f32 0.0, %v563
          %565 = vdwg.mxu0
          %566 = vst [vmem:[#allocation3] sm:$0xff] %v558
          %567 = vst [vmem:[#allocation3 + $0x8] sm:$0xff] %v562
          %v568 = vpack.c.bf16 %v564, %v560
          %v570 = vunpack.c.l.b16 %v568
          %v571 = vunpack.c.h.b16 %v568
          %v572 = vpack.c.b16 %v570, %v570
          %v573 = vpack.c.b16 %v571, %v571
          %576 = vst [vmem:[#allocation4] sm:$0xf] %v572
          %577 = vst [vmem:[#allocation4 + $0x4] sm:$0xf] %v573
          %578 = vst [vmem:[#allocation6] sm:$0x1] 0.0
          %579 = vst [vmem:[#allocation7] sm:$0x1] 0.0
        $region64: #{tpu_custom_call.1} parent=39 // pred_fallthru
          _
        %s580 = smul.u32 %s33, 16
        %s581 = scalar_lea.vmem [#allocation3], %s580
        %v582 = vld [vmem:[%s581] sm:$0xff]
        %v583 = vld [vmem:[%s581 + $0x8] sm:$0xff]
        %v584 = vld [vmem:[%s327] sm:$0xf]
        %v585 = vld [vmem:[%s327 + $0x4] sm:$0xf]
        %v586 = vld [vmem:[#allocation4] sm:$0xf]
        %v587 = vld [vmem:[#allocation4 + $0x4] sm:$0xf]
        %v590 = vunpack.c.l.b16 %v584
        %v591 = vunpack.c.l.b16 %v585
        %v592 = vpack.c.b16 %v591, %v590
        %v595 = vunpack.c.l.b16 %v586
        %v596 = vunpack.c.l.b16 %v587
        %v597 = vpack.c.b16 %v596, %v595
        %vm599 = vcmask 130048
        %v601 = vsel %vm599, %v592, 0
        %603 = vmatprep.subr.bf16.mxu0 0
        %604 = vmatpush1.bf16.msra.mxu0 0
        %605 = vmatprep.subr.bf16.mxu0 0
        %606 = vmatpush1.bf16.msra.mxu0 0
        %607 = vmatprep.subr.bf16.mxu0 0
        %608 = vmatpush1.bf16.msra.mxu0 0
        %609 = vmatprep.subr.bf16.mxu0 0
        %610 = vmatpush1.bf16.msra.mxu0 0
        %611 = vmatprep.subr.bf16.mxu0 0
        %612 = vmatpush1.bf16.msra.mxu0 0
        %613 = vmatprep.subr.bf16.mxu0 0
        %614 = vmatpush1.bf16.msra.mxu0 0
        %615 = vmatprep.subr.bf16.mxu0 0
        %616 = vmatpush1.bf16.msra.mxu0 0
        %617 = vmatprep.subr.bf16.mxu0 0
        %618 = vmatpush1.bf16.msra.mxu0 %v597
        %619 = vmatprep.subr.bf16.mxu0 0
        %620 = vmatpush2.bf16.msra.mxu0 0
        %621 = vmatprep.subr.bf16.mxu0 0
        %622 = vmatpush2.bf16.msra.mxu0 0
        %623 = vmatprep.subr.bf16.mxu0 0
        %624 = vmatpush2.bf16.msra.mxu0 0
        %625 = vmatprep.subr.bf16.mxu0 0
        %626 = vmatpush2.bf16.msra.mxu0 0
        %627 = vmatprep.subr.bf16.mxu0 0
        %628 = vmatpush2.bf16.msra.mxu0 0
        %629 = vmatprep.subr.bf16.mxu0 0
        %630 = vmatpush2.bf16.msra.mxu0 0
        %631 = vmatprep.subr.bf16.mxu0 0
        %632 = vmatpush2.bf16.msra.mxu0 0
        %633 = vmatprep.subr.bf16.mxu0 0
        %634 = vmatpush2.bf16.msra.mxu0 0
        %635 = vmatprep.mubr.bf16.mxu0 0
        %636 = vmatmul.mubr.bf16.gmra.mxu0 %v601
        %v637 = vpop.f32.mrf.mxu0
        %v638 = vadd.f32 0.0, %v637
        %v639 = vpop.f32.mrf.mxu0
        %v640 = vpop.f32.mrf.mxu0
        %v641 = vadd.f32 0.0, %v640
        %v642 = vpop.f32.mrf.mxu0
        %643 = vdwg.mxu0
        %v644 = vadd.f32 %v582, %v638
        %v645 = vadd.f32 %v583, %v641
        %s646 = scalar_lea.vmem [#allocation5], %s580
        %647 = vst [vmem:[%s646] sm:$0xff] %v644
        %648 = vst [vmem:[%s646 + $0x8] sm:$0xff] %v645
        %v649 = vld [vmem:[#allocation6] sm:$0x1]
        %v650 = vadd.f32 %v644, %v645
        %v651 = vrot.slane %v650, 4
        %v652 = vadd.f32 %v650, %v651
        %v653 = vrot.slane %v652, 2
        %v654 = vadd.f32 %v652, %v653
        %v655 = vrot.slane %v654, 1
        %v656 = vadd.f32 %v654, %v655
        %v657 = vadd.f32 %v649, %v656
        %658 = vst [vmem:[#allocation6] sm:$0x1] %v657
        %v659 = vld [vmem:[#allocation7] sm:$0x1]
        %v660 = vmul.f32 %v644, %v644
        %v661 = vmul.f32 %v645, %v645
        %v662 = vadd.f32 %v660, %v661
        %v663 = vrot.slane %v662, 4
        %v664 = vadd.f32 %v662, %v663
        %v665 = vrot.slane %v664, 2
        %v666 = vadd.f32 %v664, %v665
        %v667 = vrot.slane %v666, 1
        %v668 = vadd.f32 %v666, %v667
        %v669 = vadd.f32 %v659, %v668
        %670 = vst [vmem:[#allocation7] sm:$0x1] %v669
        %p671 = scmp.ne.s32.totalorder %s32, 2
        %p672 = pnand %p399, %p671
        %p673 = pneg %p672
        // Predicated region
        $region65: #{tpu_custom_call.1} parent=39 // pred_check
          _
        $region66: #{tpu_custom_call.1} parent=39 // pred_check_branch
          %675 = sbr.rel (%p672) target = $region68
        $region67: #{tpu_custom_call.1} parent=39 // pred_region
          %v676 = vld [vmem:[#allocation6] sm:$0x1]
          %v677 = vmul.f32 %v676, 0.0625
          %v678 = vld [vmem:[#allocation7] sm:$0x1]
          %v679 = vmul.f32 %v678, 0.0625
          %v680 = vmul.f32 %v677, %v677
          %v681 = vsub.f32 %v679, %v680
          %v682 = vld [vmem:[%s344] sm:$0x1]
          %v683 = vadd.f32 %v681, 1e-05
          %v684 = vrsqrt.pop %v683
          %v685 = vmul.f32 %v682, %v684
          %v686 = vld [vmem:[%s394] sm:$0x1]
          %v687 = vmul.f32 %v677, %v685
          %v688 = vsub.f32 %v686, %v687
          %v689 = vld [vmem:[#allocation5] sm:$0xff]
          %v690 = vld [vmem:[#allocation5 + $0x8] sm:$0xff]
          %v692 = vlaneseq
          %v693 = vshrl.u32 %v692, 7
          %v694 = vsub.s32 0, %v693
          %v695 = vrot.slane %v685, %v694
          %v697 = vmul.f32 %v689, %v695
          %v698 = vmul.f32 %v690, %v695
          %v700 = vlaneseq
          %v701 = vshrl.u32 %v700, 7
          %v702 = vsub.s32 0, %v701
          %v703 = vrot.slane %v688, %v702
          %v705 = vadd.f32 %v697, %v703
          %v706 = vadd.f32 %v698, %v703
          %v707 = vmax.f32 %v705, 0.0
          %v708 = vmax.f32 %v706, 0.0
          %v709 = vpack.c.bf16 %v708, %v707
          %v711 = vunpack.c.l.b16 %v709
          %v712 = vunpack.c.h.b16 %v709
          %v713 = vpack.c.b16 %v711, %v711
          %v714 = vpack.c.b16 %v712, %v712
          %717 = vst [vmem:[#allocation2] sm:$0xf] %v713
          %718 = vst [vmem:[#allocation2 + $0x4] sm:$0xf] %v714
        $region68: #{tpu_custom_call.1} parent=39 // pred_fallthru
          _
        %p719 = scmp.eq.s32.totalorder %s32, 2
        %p720 = pnand %p399, %p719
        %p721 = pneg %p720
        // Predicated region
        $region69: #{tpu_custom_call.1} parent=39 // pred_check
          _
        $region70: #{tpu_custom_call.1} parent=39 // pred_check_branch
          %723 = sbr.rel (%p720) target = $region72
        $region71: #{tpu_custom_call.1} parent=39 // pred_region
          %v724 = vld [vmem:[#allocation6] sm:$0x1]
          %v725 = vmul.f32 %v724, 0.0625
          %v726 = vld [vmem:[#allocation7] sm:$0x1]
          %v727 = vmul.f32 %v726, 0.0625
          %v728 = vmul.f32 %v725, %v725
          %v729 = vsub.f32 %v727, %v728
          %v730 = vld [vmem:[%s344] sm:$0x1]
          %v731 = vadd.f32 %v729, 1e-05
          %v732 = vrsqrt.pop %v731
          %v733 = vmul.f32 %v730, %v732
          %v734 = vld [vmem:[%s394] sm:$0x1]
          %v735 = vmul.f32 %v725, %v733
          %v736 = vsub.f32 %v734, %v735
          %v737 = vld [vmem:[#allocation5] sm:$0xff]
          %v738 = vld [vmem:[#allocation5 + $0x8] sm:$0xff]
          %v740 = vlaneseq
          %v741 = vshrl.u32 %v740, 7
          %v742 = vsub.s32 0, %v741
          %v743 = vrot.slane %v733, %v742
          %v745 = vmul.f32 %v737, %v743
          %v746 = vmul.f32 %v738, %v743
          %v748 = vlaneseq
          %v749 = vshrl.u32 %v748, 7
          %v750 = vsub.s32 0, %v749
          %v751 = vrot.slane %v736, %v750
          %v753 = vadd.f32 %v745, %v751
          %v754 = vadd.f32 %v746, %v751
          %755 = vst [vmem:[%s384] sm:$0xff] %v753
          %756 = vst [vmem:[%s384 + $0x8] sm:$0xff] %v754
        $region72: #{tpu_custom_call.1} parent=39 // pred_fallthru
          _
        %s757 = sand.u32 %s192, 1
        %s758 = scalar_lea.sflag [#allocation10], %s757
        %s759 = sand.u32 %s192, 1
        %s760 = smul.addr %s759, 16
        %s761 = scalar_lea.vmem [#allocation16], %s760
        // Predicated region
        $region73: #{tpu_custom_call.1} parent=39 // pred_check
          %p762 = pneg %p202
        $region74: #{tpu_custom_call.1} parent=39 // pred_check_branch
          %764 = sbr.rel (%p762) target = $region76
        $region75: #{tpu_custom_call.1} parent=39 // pred_region
          %s766 = ssub.s32 256, 256
          %767 = vsyncadd %s758, %s766
          %s768 = smul.addr %s31, 2
          %s769 = smul.addr %s768, 128
          %s770 = scalar_lea.hbm %s5, %s769
          %s771 = sshll.u32 %s761, 4
          %s772 = int_to_ptr.vmem [resolvable:$true] %s771
          %777 = dma.vmem_to_hbm [thread:$0]  %s772, 256, %s770, %s758, 128, 128, 8
        $region76: #{tpu_custom_call.1} parent=39 // pred_fallthru
          _
      $region40: #{tpu_custom_call.1} parent=5 // pred_fallthru
        _
      %p778 = scmp.le.s32.totalorder 2, %s21
      // Predicated region
      $region77: #{tpu_custom_call.1} parent=5 // pred_check
        %p779 = pneg %p778
      $region78: #{tpu_custom_call.1} parent=5 // pred_check_branch
        %781 = sbr.rel (%p779) target = $region80
      $region79: #{tpu_custom_call.1} parent=5 // pred_region
        %s782 = ssub.s32 %s21, 2
        // Predicated region
        $region81: #{tpu_custom_call.1} parent=79 // pred_check
          %p783 = pneg %p208
        $region82: #{tpu_custom_call.1} parent=79 // pred_check_branch
          %785 = sbr.rel (%p783) target = $region84
        $region83: #{tpu_custom_call.1} parent=79 // pred_region
          %s786 = sand.u32 %s193, 1
          %s787 = scalar_lea.sflag [#allocation10], %s786
          %s788 = sand.u32 %s193, 1
          %s789 = smul.addr %s788, 16
          %s790 = scalar_lea.vmem [#allocation16], %s789
          %791 = dma.done %s787, 256
        $region84: #{tpu_custom_call.1} parent=79 // pred_fallthru
          _
      $region80: #{tpu_custom_call.1} parent=5 // pred_fallthru
        _
    $region6: #{tpu_custom_call.1} parent=1 // loop_footer
      %s25 = sadd.s32 1, %s21
    $region7: #{tpu_custom_call.1} parent=1 // loop_footer_branch
      %20 = sbr.rel target = $region3
    $region8: #{tpu_custom_call.1} parent=1 // loop_exit
      _
    %792 = vsyncpa [#allocation9], 1
    %s793 = scalar_lea.sflag [#allocation9], 1
    %794 = vsyncpa %s793, 1
    %795 = vsyncpa [#allocation12], 1
    %s796 = scalar_lea.sflag [#allocation12], 1
    %797 = vsyncpa %s796, 1
    %798 = vsyncpa [#allocation15], 1
    %s799 = scalar_lea.sflag [#allocation15], 1
    %800 = vsyncpa %s799, 1
    %801 = vsyncpa [#allocation10], 1
    %s802 = scalar_lea.sflag [#allocation10], 1
    %803 = vsyncpa %s802, 1

</llo_original>
